<compile_context>
chip_gen: v7x
topology: tpu7x:2x2x1
jax: 0.10.0
libtpu: 0.0.40
codegen_flags: <defaults>
</compile_context>

<pallas_src>
from functools import partial

import jax
import jax.numpy as jnp
from jax.experimental import pallas as pl
from jax.experimental.pallas import tpu as pltpu


def _round_up(x, m):
    return (x + m - 1) // m * m


# ---------------------------------------------------------------------------
# Small path: ungridded, whole (tiny) arrays in VMEM, VPU contraction.
# Only used for F <= 8 and B*O <= 1024, i.e. the shapes this module implies.
# ---------------------------------------------------------------------------
def _small_linear_kernel(x_ref, w_ref, b_ref, o_ref):
    # x: (B, F) f32, w: (F, O) f32, b: (1, O) f32, o: (B, O) f32
    x = x_ref[...]
    w = w_ref[...]
    F = x_ref.shape[1]
    acc = x[:, 0:1] * w[0:1, :]                      # (B,1)*(1,O) -> (B,O)
    for f in range(1, F):                            # statically unrolled, F <= 8
        acc = acc + x[:, f:f + 1] * w[f:f + 1, :]
    o_ref[...] = (acc + b_ref[...]).astype(o_ref.dtype)


def _linear_small(x, w_t, b):
    B, F = x.shape
    O = w_t.shape[1]
    # No host-side padding / output slicing: full-array blocks are exempt from the
    # (8,128) rule, and for this tiny problem the wrapper pad/slice XLA ops were
    # most of the wall clock.
    return pl.pallas_call(
        _small_linear_kernel,
        out_shape=jax.ShapeDtypeStruct((B, O), jnp.float32),
        in_specs=[
            pl.BlockSpec(memory_space=pltpu.MemorySpace.VMEM),
            pl.BlockSpec(memory_space=pltpu.MemorySpace.VMEM),
            pl.BlockSpec(memory_space=pltpu.MemorySpace.VMEM),
        ],
        out_specs=pl.BlockSpec(memory_space=pltpu.MemorySpace.VMEM),
        cost_estimate=pl.CostEstimate(
            flops=2 * B * F * O,
            transcendentals=0,
            bytes_accessed=4 * (B * F + F * O + B * O + O),
        ),
    )(x, w_t, b.reshape(1, O))


# ---------------------------------------------------------------------------
# Tiled path: (M, N, K) grid, K-last reduction, f32 VMEM accumulator, MXU matmul.
# ---------------------------------------------------------------------------
def _tiled_linear_kernel(x_ref, w_ref, b_ref, o_ref, acc_ref):
    @pl.when(pl.program_id(2) == 0)
    def _():
        # Initialize the accumulator with the broadcast bias: removes a full
        # (tm, tn) VPU pass + sublane broadcast from the k==last epilogue.
        acc_ref[...] = jnp.broadcast_to(b_ref[...], acc_ref.shape).astype(jnp.float32)

    acc_ref[...] += jnp.dot(
        x_ref[...], w_ref[...], preferred_element_type=jnp.float32
    )

    @pl.when(pl.program_id(2) == pl.num_programs(2) - 1)
    def _():
        o_ref[...] = acc_ref[...].astype(o_ref.dtype)


def _linear_tiled(x, w_t, b, *, tm=512, tn=512, tk=512, use_bf16=False):
    B, F = x.shape
    O = w_t.shape[1]

    # Clamp tiles to the ((8,128)-rounded) problem so small/medium layers don't
    # inflate into mostly-padding blocks.
    tm = min(tm, _round_up(B, 8))
    tn = min(tn, _round_up(O, 128))

    # K tile: use a single K block (no K grid loop) for F up to 1024, otherwise
    # stream K in `tk`-sized steps.  K is the only dim that must be zero-padded:
    # unspecified values in an overhanging K block would feed real outputs,
    # whereas M/N overhang only pollutes rows/cols the masked store discards.
    f_aligned = _round_up(F, 128)
    if f_aligned <= max(tk, 1024):
        tk = f_aligned
    Fp = _round_up(F, tk)
    if Fp != F:
        x = jnp.pad(x, ((0, 0), (0, Fp - F)))
        w_t = jnp.pad(w_t, ((0, Fp - F), (0, 0)))

    # v7x megacore: the 2 TensorCores shard the "parallel" grid axes, so make sure
    # there are >= 2 blocks across (M, N) whenever there is enough work to split.
    # Harmless on v5e/v6e (1 TC).
    if pl.cdiv(B, tm) * pl.cdiv(O, tn) < 2:
        if B >= 16 and tm > 8:
            tm = max(8, _round_up(pl.cdiv(B, 2), 8))
        elif O >= 256 and tn > 128:
            tn = max(128, _round_up(pl.cdiv(O, 2), 128))

    grid_m = pl.cdiv(B, tm)
    grid_n = pl.cdiv(O, tn)
    grid_k = Fp // tk
    grid = (grid_m, grid_n, grid_k)

    if use_bf16:
        # Optional: bf16 operands hit the MXU bf16 peak and halve HBM bytes for
        # x/W; accumulation stays f32 via preferred_element_type.
        x = x.astype(jnp.bfloat16)
        w_t = w_t.astype(jnp.bfloat16)
    itemsize = 2 if use_bf16 else 4

    # VMEM working set at 512-cubed f32 is ~8 MiB (double-buffered x/w/out + acc);
    # 48 MiB leaves room for 1024-class N tiles while staying under the v7x 64 MiB
    # physical ceiling (v5e/v6e have 128 MiB physical).
    params = pltpu.CompilerParams(
        dimension_semantics=("parallel", "parallel", "arbitrary"),
        vmem_limit_bytes=48 * 1024 * 1024,
    )

    cost = pl.CostEstimate(
        flops=2 * B * Fp * O,
        transcendentals=0,
        # x is re-read once per N tile, W once per M tile; bias per M tile; out once.
        bytes_accessed=(itemsize * (B * Fp * grid_n + Fp * O * grid_m)
                        + 4 * (B * O + O * grid_m)),
    )

    # NOTE: if DMA is still exposed after the tile increase, the W spec can take
    # pipeline_mode=pl.Buffered(3) for deeper buffering (few-% win, left default).
    out = pl.pallas_call(
        _tiled_linear_kernel,
        out_shape=jax.ShapeDtypeStruct((B, O), jnp.float32),
        grid=grid,
        in_specs=[
            pl.BlockSpec((tm, tk), lambda i, j, k: (i, k)),
            pl.BlockSpec((tk, tn), lambda i, j, k: (k, j)),
            pl.BlockSpec((1, tn), lambda i, j, k: (0, j)),
        ],
        out_specs=pl.BlockSpec((tm, tn), lambda i, j, k: (i, j)),
        scratch_shapes=[pltpu.VMEM((tm, tn), jnp.float32)],
        compiler_params=params,
        cost_estimate=cost,
    )(x, w_t, b.reshape(1, O))
    return out


# ---------------------------------------------------------------------------
# Public forward: picks the path from static shapes.
# ---------------------------------------------------------------------------
@partial(jax.jit, static_argnames=("use_bf16",))
def linear_forward(x, w_t, b, *, use_bf16=False):
    """x: (B, F) f32, w_t: (F, O) f32 (pre-transposed weight), b: (O,) f32 -> (B, O)."""
    B, F = x.shape
    O = w_t.shape[1]
    if F <= 8 and B * O <= 8 * 128:
        return _linear_small(x, w_t, b)
    return _linear_tiled(x, w_t, b, use_bf16=use_bf16)


if __name__ == "__main__":
    # Shapes implied by the module: x_train.size(1) -> input_size, output_size = 3.
    batch, input_size, output_size = 8, 4, 3

    key = jax.random.PRNGKey(0)
    kx, kw, kb = jax.random.split(key, 3)

    bound = 1.0 / (input_size ** 0.5)
    weight = jax.random.uniform(kw, (output_size, input_size),
                                minval=-bound, maxval=bound, dtype=jnp.float32)  # (O, F)
    bias = jax.random.uniform(kb, (output_size,),
                              minval=-bound, maxval=bound, dtype=jnp.float32)
    x = jax.random.normal(kx, (batch, input_size), dtype=jnp.float32)

    # Glue: pre-transpose weight so the kernel does x(B,F) @ W(F,O).
    w_t = jnp.transpose(weight)

    y_pred = jax.block_until_ready(linear_forward(x, w_t, bias))
    y_ref = jnp.dot(x, weight.T, precision=jax.lax.Precision.HIGHEST) + bias
    assert y_pred.shape == (batch, output_size)
    assert jnp.allclose(y_pred, y_ref, atol=1e-5, rtol=1e-5)

    # Tiled path, f32 operands: exercises the ">=2 parallel blocks" split for v7x
    # (tm 512 -> 256 here) and the pad-free M/N handling.
    B2, F2, O2 = 512, 512, 256
    k2x, k2w, k2b = jax.random.split(jax.random.PRNGKey(1), 3)
    x2 = jax.random.normal(k2x, (B2, F2), dtype=jnp.float32)
    w2 = jax.random.normal(k2w, (O2, F2), dtype=jnp.float32) * 0.05
    b2 = jax.random.normal(k2b, (O2,), dtype=jnp.float32)

    y2 = jax.block_until_ready(linear_forward(x2, jnp.transpose(w2), b2))
    y2_ref = jnp.dot(x2, w2.T, precision=jax.lax.Precision.HIGHEST) + b2
    assert y2.shape == (B2, O2)
    assert jnp.allclose(y2, y2_ref, atol=2e-2, rtol=2e-2)

    # Tiled path, bf16 operands + f32 accumulation: exercises K zero-padding
    # (F=600 -> 640) and non-multiple M/N boundary blocks (masked output store).
    B3, F3, O3 = 256, 600, 200
    k3x, k3w, k3b = jax.random.split(jax.random.PRNGKey(2), 3)
    x3 = jax.random.normal(k3x, (B3, F3), dtype=jnp.float32)
    w3 = jax.random.normal(k3w, (O3, F3), dtype=jnp.float32) * 0.05
    b3 = jax.random.normal(k3b, (O3,), dtype=jnp.float32)

    y3 = jax.block_until_ready(linear_forward(x3, jnp.transpose(w3), b3, use_bf16=True))
    y3_ref = jnp.dot(x3, w3.T, precision=jax.lax.Precision.HIGHEST) + b3
    assert y3.shape == (B3, O3)
    assert bool(jnp.all(jnp.isfinite(y3)))
    assert float(jnp.max(jnp.abs(y3 - y3_ref))) < 0.1   # bf16-operand tolerance

    print("KERNEL_OK")
</pallas_src>

<mosaic_0001>
module attributes {stable_mosaic.version = 11 : i64} {
  func.func @_small_linear_kernel(%arg0: memref<8x4xf32, #tpu.memory_space<vmem>>, %arg1: memref<4x3xf32, #tpu.memory_space<vmem>>, %arg2: memref<1x3xf32, #tpu.memory_space<vmem>>, %arg3: memref<8x3xf32, #tpu.memory_space<vmem>>) attributes {dimension_semantics = [], scalar_prefetch = 0 : i64, scratch_operands = 0 : i64, tpu.core_type = #tpu.core_type<tc>} {
    %c0 = arith.constant 0 : index
    %c0_0 = arith.constant 0 : index
    %0 = vector.load %arg0[%c0, %c0_0] : memref<8x4xf32, #tpu.memory_space<vmem>>, vector<8x4xf32>
    %c0_1 = arith.constant 0 : index
    %c0_2 = arith.constant 0 : index
    %1 = vector.load %arg1[%c0_1, %c0_2] : memref<4x3xf32, #tpu.memory_space<vmem>>, vector<4x3xf32>
    %2 = vector.extract_strided_slice %0 {offsets = [0, 0], sizes = [8, 1], strides = [1, 1]} : vector<8x4xf32> to vector<8x1xf32>
    %3 = vector.extract_strided_slice %1 {offsets = [0, 0], sizes = [1, 3], strides = [1, 1]} : vector<4x3xf32> to vector<1x3xf32>
    %4 = vector.broadcast %2 : vector<8x1xf32> to vector<8x3xf32>
    %5 = vector.broadcast %3 : vector<1x3xf32> to vector<8x3xf32>
    %6 = arith.mulf %4, %5 : vector<8x3xf32>
    %7 = vector.extract_strided_slice %0 {offsets = [0, 1], sizes = [8, 1], strides = [1, 1]} : vector<8x4xf32> to vector<8x1xf32>
    %8 = vector.extract_strided_slice %1 {offsets = [1, 0], sizes = [1, 3], strides = [1, 1]} : vector<4x3xf32> to vector<1x3xf32>
    %9 = vector.broadcast %7 : vector<8x1xf32> to vector<8x3xf32>
    %10 = vector.broadcast %8 : vector<1x3xf32> to vector<8x3xf32>
    %11 = arith.mulf %9, %10 : vector<8x3xf32>
    %12 = arith.addf %6, %11 : vector<8x3xf32>
    %13 = vector.extract_strided_slice %0 {offsets = [0, 2], sizes = [8, 1], strides = [1, 1]} : vector<8x4xf32> to vector<8x1xf32>
    %14 = vector.extract_strided_slice %1 {offsets = [2, 0], sizes = [1, 3], strides = [1, 1]} : vector<4x3xf32> to vector<1x3xf32>
    %15 = vector.broadcast %13 : vector<8x1xf32> to vector<8x3xf32>
    %16 = vector.broadcast %14 : vector<1x3xf32> to vector<8x3xf32>
    %17 = arith.mulf %15, %16 : vector<8x3xf32>
    %18 = arith.addf %12, %17 : vector<8x3xf32>
    %19 = vector.extract_strided_slice %0 {offsets = [0, 3], sizes = [8, 1], strides = [1, 1]} : vector<8x4xf32> to vector<8x1xf32>
    %20 = vector.extract_strided_slice %1 {offsets = [3, 0], sizes = [1, 3], strides = [1, 1]} : vector<4x3xf32> to vector<1x3xf32>
    %21 = vector.broadcast %19 : vector<8x1xf32> to vector<8x3xf32>
    %22 = vector.broadcast %20 : vector<1x3xf32> to vector<8x3xf32>
    %23 = arith.mulf %21, %22 : vector<8x3xf32>
    %24 = arith.addf %18, %23 : vector<8x3xf32>
    %c0_3 = arith.constant 0 : index
    %c0_4 = arith.constant 0 : index
    %25 = vector.load %arg2[%c0_3, %c0_4] : memref<1x3xf32, #tpu.memory_space<vmem>>, vector<1x3xf32>
    %26 = vector.broadcast %25 : vector<1x3xf32> to vector<8x3xf32>
    %27 = arith.addf %24, %26 : vector<8x3xf32>
    %c0_5 = arith.constant 0 : index
    %c0_6 = arith.constant 0 : index
    %28 = vector.load %arg3[%c0_5, %c0_6] : memref<8x3xf32, #tpu.memory_space<vmem>>, vector<8x3xf32>
    tpu.vector_store %arg3[%c0_5, %c0_6], %27 {strides = array<i32>} : memref<8x3xf32, #tpu.memory_space<vmem>>, vector<8x3xf32>,
    return
  }
}

</mosaic_0001>

<llo_original>
// kernel: linear_forward.1
$region0: #{linear_forward.1}
  #allocation0 [shape = 'u32[]', space=smem, size = 0x4, offset = 0x4, fixed_abs, tag = 'smem constant byte address 0x4 - core index']
  #allocation1 [shape = 'u32[144,128]{1,0:T(1,128)}', space=vmem, size = 0x12000, scoped, tag = 'internal scratch']
  %s0 = inlined_call_operand.vmem [shape: f32[8,4], index: 0, kind: input, shape index: {}]
  %s1 = inlined_call_operand.vmem [shape: f32[4,3], index: 1, kind: input, shape index: {}]
  %s2 = inlined_call_operand.vmem [shape: f32[1,3], index: 2, kind: input, shape index: {}]
  %s3 = inlined_call_operand.vmem [shape: f32[8,3], index: 3, kind: output, shape index: {}]
  %s4 = sld [smem:[#allocation0]]
  $region22: #{linear_forward.1} parent=0
    _
  %s6 = ssub.s32 1, %s4
  %s7 = scalar_select 0, %s6, %s4
  // Predicated region
  $region2: #{linear_forward.1} parent=0 // pred_check
    _
  $region3: #{linear_forward.1} parent=0 // pred_check_branch
    %9 = sbr.rel (0) target = $region5
  $region4: #{linear_forward.1} parent=0 // pred_region
    _
  $region5: #{linear_forward.1} parent=0 // pred_fallthru
    _
  // Predicated region
  $region6: #{linear_forward.1} parent=0 // pred_check
    _
  $region7: #{linear_forward.1} parent=0 // pred_check_branch
    %11 = sbr.rel (0) target = $region9
  $region8: #{linear_forward.1} parent=0 // pred_region
    _
  $region9: #{linear_forward.1} parent=0 // pred_fallthru
    _
  // Predicated region
  $region10: #{linear_forward.1} parent=0 // pred_check
    _
  $region11: #{linear_forward.1} parent=0 // pred_check_branch
    %13 = sbr.rel (0) target = $region13
  $region12: #{linear_forward.1} parent=0 // pred_region
    _
  $region13: #{linear_forward.1} parent=0 // pred_fallthru
    _
  %v14 = vld [vmem:[%s0] sm:$0xff]
  %v15 = vld [vmem:[%s1] sm:$0xf]
  %17 = vset.pattern.permute.xlu0 0
  %18 = vperm.xlu0 %17, %v14
  %v19 = vpop.permute.xlu0 %18
  %v21 = vlaneseq
  %v22 = vshrl.u32 %v21, 7
  %v23 = vsub.s32 0, %v22
  %v24 = vrot.slane %v15, %v23
  %v25 = vmul.f32 %v19, %v24
  %26 = vset.pattern.permute.xlu0 1
  %27 = vperm.xlu0 %26, %v14
  %v28 = vpop.permute.xlu0 %27
  %v30 = vlaneseq
  %v31 = vshrl.u32 %v30, 7
  %v32 = vsub.s32 1, %v31
  %v33 = vrot.slane %v15, %v32
  %v34 = vmul.f32 %v28, %v33
  %v35 = vadd.f32 %v25, %v34
  %36 = vset.pattern.permute.xlu0 2
  %37 = vperm.xlu0 %36, %v14
  %v38 = vpop.permute.xlu0 %37
  %v40 = vlaneseq
  %v41 = vshrl.u32 %v40, 7
  %v42 = vsub.s32 2, %v41
  %v43 = vrot.slane %v15, %v42
  %v44 = vmul.f32 %v38, %v43
  %v45 = vadd.f32 %v35, %v44
  %46 = vset.pattern.permute.xlu0 3
  %47 = vperm.xlu0 %46, %v14
  %v48 = vpop.permute.xlu0 %47
  %v50 = vlaneseq
  %v51 = vshrl.u32 %v50, 7
  %v52 = vsub.s32 3, %v51
  %v53 = vrot.slane %v15, %v52
  %v54 = vmul.f32 %v48, %v53
  %v55 = vadd.f32 %v45, %v54
  %v56 = vld [vmem:[%s2] sm:$0x1]
  %v58 = vlaneseq
  %v59 = vshrl.u32 %v58, 7
  %v60 = vsub.s32 0, %v59
  %v61 = vrot.slane %v56, %v60
  %v63 = vadd.f32 %v55, %v61
  %vm64 = vcmask 23552
  %65 = vst.msk [vmem:[%s3] sm:$0xff] %vm64, %v63
  // Predicated region
  $region14: #{linear_forward.1} parent=0 // pred_check
    _
  $region15: #{linear_forward.1} parent=0 // pred_check_branch
    %67 = sbr.rel (0) target = $region17
  $region16: #{linear_forward.1} parent=0 // pred_region
    _
  $region17: #{linear_forward.1} parent=0 // pred_fallthru
    _
  // Predicated region
  $region18: #{linear_forward.1} parent=0 // pred_check
    _
  $region19: #{linear_forward.1} parent=0 // pred_check_branch
    %69 = sbr.rel (0) target = $region21
  $region20: #{linear_forward.1} parent=0 // pred_region
    _
  $region21: #{linear_forward.1} parent=0 // pred_fallthru
    _

</llo_original>
